<compile_context>
chip_gen: v7x
topology: tpu7x:2x2x1
jax: 0.10.0
libtpu: 0.0.40
codegen_flags: <defaults>
</compile_context>

<pallas_src>
import functools

import numpy as np
import jax
import jax.numpy as jnp
from jax.experimental import pallas as pl
from jax.experimental.pallas import tpu as pltpu


def make_pos_encoding_params(dim, base=10000, bias=0.0):
    """Deterministic buffers matching PosEncoding.__init__ (reciprocal form)."""
    inv = []
    sft = []
    for i in range(dim):
        b = (i - i % 2) / dim
        inv.append(float(base) ** b)                       # == 1 / (base ** (-b))
        sft.append(np.pi / 2.0 + bias if i % 2 else float(bias))
    inv_base = jnp.asarray(np.asarray(inv, dtype=np.float32)).reshape(1, -1)
    sft_buf = jnp.asarray(np.asarray(sft, dtype=np.float32)).reshape(1, -1)
    return inv_base, sft_buf


def _pos_enc_kernel(pos_ref, const_ref, o_ref, *, k, dim):
    # pos_ref: (tile_r, k), const_ref: (2, k*dim), o_ref: (tile_r, k*dim)
    inv = const_ref[0:1, :]
    sft = const_ref[1:2, :]
    if k == 1:
        o_ref[...] = jnp.sin(pos_ref[...] * inv + sft)
    else:
        pos = pos_ref[...]
        tile_r = pos.shape[0]
        # Stage chunk-broadcast positions into the lane-dense output tile, then
        # do the multiply/add/sin once on full-width (128-lane) vregs.
        for j in range(k):
            o_ref[:, j * dim:(j + 1) * dim] = jnp.broadcast_to(
                pos[:, j:j + 1], (tile_r, dim))
        o_ref[...] = jnp.sin(o_ref[...] * inv + sft)


def _round_up(a, b):
    return ((a + b - 1) // b) * b


def pos_encoding(pos, inv_base, sft, *, target_tile_bytes=4 * 1024 * 1024):
    """Forward pass of PosEncoding. Returns float32 array pos.shape + (dim,)."""
    inv_base = jnp.asarray(inv_base, jnp.float32).reshape(1, -1)
    sft = jnp.asarray(sft, jnp.float32).reshape(1, -1)
    dim = inv_base.shape[-1]

    pos = jnp.asarray(pos, jnp.float32)
    out_shape = tuple(pos.shape) + (dim,)
    pos_flat = pos.reshape(-1)
    n = pos_flat.shape[0]

    # Lane-packing factor: pack k positions per stored row so the output last
    # dim is a multiple of 128 when dim < 128.
    k = 128 // dim if (dim < 128 and 128 % dim == 0) else 1
    width = k * dim

    rows = -(-n // k)
    tile_r = max(8, (target_tile_bytes // (width * 4)) // 8 * 8)
    tile_r = min(tile_r, _round_up(rows, 8))
    rows_total = _round_up(rows, tile_r)

    n_total = rows_total * k
    if n_total > n:
        pos_flat = jnp.pad(pos_flat, (0, n_total - n))
    pos_2d = pos_flat.reshape(rows_total, k)

    # Fused grid-invariant constants: row 0 = reciprocal base, row 1 = shift.
    const = jnp.concatenate(
        [jnp.tile(inv_base, (1, k)), jnp.tile(sft, (1, k))], axis=0)

    grid = (rows_total // tile_r,)
    out = pl.pallas_call(
        functools.partial(_pos_enc_kernel, k=k, dim=dim),
        out_shape=jax.ShapeDtypeStruct((rows_total, width), jnp.float32),
        grid_spec=pltpu.PrefetchScalarGridSpec(
            num_scalar_prefetch=0,
            grid=grid,
            in_specs=[
                pl.BlockSpec((tile_r, k), lambda i: (i, 0)),
                pl.BlockSpec((2, width), lambda i: (0, 0)),
            ],
            out_specs=pl.BlockSpec((tile_r, width), lambda i: (i, 0)),
        ),
        compiler_params=pltpu.CompilerParams(
            dimension_semantics=("parallel",),
            vmem_limit_bytes=64 * 1024 * 1024,
        ),
    )(pos_2d, const)

    out = out.reshape(rows_total * k, dim)[:n]
    return out.reshape(out_shape)


def _reference_f64(pos_np, dim, base=10000, bias=0.0):
    """Float64 reference with the exact module math; returns (sin(x), x)."""
    i = np.arange(dim, dtype=np.float64)
    base64 = np.power(float(base), -((i - i % 2) / dim))
    sft64 = np.where((np.arange(dim) % 2) == 1, np.pi / 2.0 + bias, float(bias))
    pos64 = np.asarray(pos_np, dtype=np.float64).reshape(-1, 1)
    x64 = pos64 / base64[None, :] + sft64[None, :]
    return np.sin(x64), x64


if __name__ == "__main__":
    key = jax.random.PRNGKey(0)

    def run_case(dim, pos_shape):
        inv_base, sft = make_pos_encoding_params(dim, base=10000, bias=0.0)
        pos = jax.random.uniform(key, pos_shape, dtype=jnp.float32) * 100.0
        out = jax.block_until_ready(pos_encoding(pos, inv_base, sft))
        assert out.shape == pos_shape + (dim,)

        ref, x64 = _reference_f64(np.asarray(pos), dim)
        ref = ref.reshape(pos_shape + (dim,))
        x64 = x64.reshape(pos_shape + (dim,))
        # The sin argument is a float32 quantity as large as ~1e5; any f32 sin
        # implementation is only determined to a few ulp(|x|), so the tolerance
        # scales with |x| (tight for small-argument channels).
        tol = 16.0 * np.finfo(np.float32).eps * np.abs(x64) + 1e-4
        err = np.abs(np.asarray(out, dtype=np.float64) - ref)
        assert np.all(err <= tol), f"max excess err {float(np.max(err - tol))}"

    run_case(32, (2, 8))    # dim < 128 -> lane-packed path (k = 4, width = 128)
    run_case(128, (2, 8))   # dim == 128 -> direct lane-dense path (k = 1)
    print("KERNEL_OK")
</pallas_src>

<mosaic_0001>
module attributes {stable_mosaic.version = 11 : i64} {
  func.func @_pos_enc_kernel(%arg0: i32, %arg1: memref<8x4xf32, #tpu.memory_space<vmem>>, %arg2: memref<2x128xf32, #tpu.memory_space<vmem>>, %arg3: memref<8x128xf32, #tpu.memory_space<vmem>>) attributes {dimension_semantics = [#tpu.dimension_semantics<parallel>], iteration_bounds = array<i64: 1>, scalar_prefetch = 0 : i64, scratch_operands = 0 : i64, tpu.core_type = #tpu.core_type<tc>, window_params = [{transform_indices = @transform_0, window_bounds = array<i64: 8, 4>}, {pipeline_mode = #tpu.pipeline_mode<synchronous>, transform_indices = @transform_1, window_bounds = array<i64: 2, 128>}, {transform_indices = @transform_2, window_bounds = array<i64: 8, 128>}]} {
    %c0 = arith.constant 0 : index
    %c0_0 = arith.constant 0 : index
    %0 = vector.load %arg2[%c0, %c0_0] : memref<2x128xf32, #tpu.memory_space<vmem>>, vector<1x128xf32>
    %c1 = arith.constant 1 : index
    %c0_1 = arith.constant 0 : index
    %1 = vector.load %arg2[%c1, %c0_1] : memref<2x128xf32, #tpu.memory_space<vmem>>, vector<1x128xf32>
    %c0_2 = arith.constant 0 : index
    %c0_3 = arith.constant 0 : index
    %2 = vector.load %arg1[%c0_2, %c0_3] : memref<8x4xf32, #tpu.memory_space<vmem>>, vector<8x4xf32>
    %3 = vector.extract_strided_slice %2 {offsets = [0, 0], sizes = [8, 1], strides = [1, 1]} : vector<8x4xf32> to vector<8x1xf32>
    %4 = vector.shape_cast %3 : vector<8x1xf32> to vector<8x1xf32>
    %5 = vector.broadcast %4 : vector<8x1xf32> to vector<8x32xf32>
    %c0_4 = arith.constant 0 : index
    %c0_5 = arith.constant 0 : index
    %6 = vector.load %arg3[%c0_4, %c0_5] : memref<8x128xf32, #tpu.memory_space<vmem>>, vector<8x32xf32>
    tpu.vector_store %arg3[%c0_4, %c0_5], %5 {strides = array<i32>} : memref<8x128xf32, #tpu.memory_space<vmem>>, vector<8x32xf32>,
    %7 = vector.extract_strided_slice %2 {offsets = [0, 1], sizes = [8, 1], strides = [1, 1]} : vector<8x4xf32> to vector<8x1xf32>
    %8 = vector.shape_cast %7 : vector<8x1xf32> to vector<8x1xf32>
    %9 = vector.broadcast %8 : vector<8x1xf32> to vector<8x32xf32>
    %c0_6 = arith.constant 0 : index
    %c32 = arith.constant 32 : index
    %10 = vector.load %arg3[%c0_6, %c32] : memref<8x128xf32, #tpu.memory_space<vmem>>, vector<8x32xf32>
    tpu.vector_store %arg3[%c0_6, %c32], %9 {strides = array<i32>} : memref<8x128xf32, #tpu.memory_space<vmem>>, vector<8x32xf32>,
    %11 = vector.extract_strided_slice %2 {offsets = [0, 2], sizes = [8, 1], strides = [1, 1]} : vector<8x4xf32> to vector<8x1xf32>
    %12 = vector.shape_cast %11 : vector<8x1xf32> to vector<8x1xf32>
    %13 = vector.broadcast %12 : vector<8x1xf32> to vector<8x32xf32>
    %c0_7 = arith.constant 0 : index
    %c64 = arith.constant 64 : index
    %14 = vector.load %arg3[%c0_7, %c64] : memref<8x128xf32, #tpu.memory_space<vmem>>, vector<8x32xf32>
    tpu.vector_store %arg3[%c0_7, %c64], %13 {strides = array<i32>} : memref<8x128xf32, #tpu.memory_space<vmem>>, vector<8x32xf32>,
    %15 = vector.extract_strided_slice %2 {offsets = [0, 3], sizes = [8, 1], strides = [1, 1]} : vector<8x4xf32> to vector<8x1xf32>
    %16 = vector.shape_cast %15 : vector<8x1xf32> to vector<8x1xf32>
    %17 = vector.broadcast %16 : vector<8x1xf32> to vector<8x32xf32>
    %c0_8 = arith.constant 0 : index
    %c96 = arith.constant 96 : index
    %18 = vector.load %arg3[%c0_8, %c96] : memref<8x128xf32, #tpu.memory_space<vmem>>, vector<8x32xf32>
    tpu.vector_store %arg3[%c0_8, %c96], %17 {strides = array<i32>} : memref<8x128xf32, #tpu.memory_space<vmem>>, vector<8x32xf32>,
    %c0_9 = arith.constant 0 : index
    %c0_10 = arith.constant 0 : index
    %19 = vector.load %arg3[%c0_9, %c0_10] : memref<8x128xf32, #tpu.memory_space<vmem>>, vector<8x128xf32>
    %20 = vector.broadcast %0 : vector<1x128xf32> to vector<8x128xf32>
    %21 = arith.mulf %19, %20 : vector<8x128xf32>
    %22 = vector.broadcast %1 : vector<1x128xf32> to vector<8x128xf32>
    %23 = arith.addf %21, %22 : vector<8x128xf32>
    %24 = math.sin %23 : vector<8x128xf32>
    %c0_11 = arith.constant 0 : index
    %c0_12 = arith.constant 0 : index
    %25 = vector.load %arg3[%c0_11, %c0_12] : memref<8x128xf32, #tpu.memory_space<vmem>>, vector<8x128xf32>
    tpu.vector_store %arg3[%c0_11, %c0_12], %24 {strides = array<i32>} : memref<8x128xf32, #tpu.memory_space<vmem>>, vector<8x128xf32>,
    return
  }
  func.func @transform_0(%arg0: i32) -> (i32, i32) {
    %c0_i32 = arith.constant 0 : i32
    %c0_i32_0 = arith.constant 0 : i32
    return %arg0, %c0_i32 : i32, i32
  }
  func.func @transform_1(%arg0: i32) -> (i32, i32) {
    %c0_i32 = arith.constant 0 : i32
    %c0_i32_0 = arith.constant 0 : i32
    %c0_i32_1 = arith.constant 0 : i32
    return %c0_i32, %c0_i32_0 : i32, i32
  }
  func.func @transform_2(%arg0: i32) -> (i32, i32) {
    %c0_i32 = arith.constant 0 : i32
    %c0_i32_0 = arith.constant 0 : i32
    return %arg0, %c0_i32 : i32, i32
  }
}

</mosaic_0001>

<llo_original>
// kernel: tpu_custom_call.1
$region0: #{tpu_custom_call.1}
  #allocation0 [shape = 'u32[]', space=smem, size = 0x4, offset = 0x4, fixed_abs, tag = 'smem constant byte address 0x4 - core index']
  #allocation1 [shape = 'u32[144,128]{1,0:T(1,128)}', space=vmem, size = 0x12000, scoped, tag = 'internal scratch']
  %s0 = inlined_call_operand.hbm [shape: f32[8,4], index: 0, kind: input, shape index: {}]
  %s1 = inlined_call_operand.hbm [shape: f32[2,128], index: 1, kind: input, shape index: {}]
  %s2 = inlined_call_operand.hbm [shape: f32[8,128], index: 2, kind: output, shape index: {}]
  %s3 = sld [smem:[#allocation0]]
  $region26: #{tpu_custom_call.1} parent=0
    _
  %s5 = ssub.s32 1, %s3
  %s6 = scalar_select 0, %s5, %s3
  $region1: #{tpu_custom_call.1} parent=0
    #allocation2 [shape = 'u8[4096]{0}', space=vmem, size = 0x1000, scoped, tag = 'input window, operand 0, single buffered']
    #allocation3 [shape = 's32[1]{0}', space=sflag, size = 0x4, scoped, tag = 'scoped memory for tpu_custom_call.1']
    #allocation4 [shape = 's32[1]{0}', space=sflag, size = 0x4, scoped, tag = 'scoped memory for tpu_custom_call.1']
    #allocation5 [shape = 'u8[1024]{0}', space=vmem, size = 0x400, scoped, tag = 'input window, operand 1, single buffered']
    #allocation6 [shape = 's32[1]{0}', space=sflag, size = 0x4, scoped, tag = 'scoped memory for tpu_custom_call.1']
    #allocation7 [shape = 'u8[4096]{0}', space=vmem, size = 0x1000, scoped, tag = 'output window, operand 0, single buffered']
    %7 = vsyncpa [#allocation3], 0
    %8 = vsyncpa [#allocation6], 0
    %9 = vsyncpa [#allocation4], 0
    // Predicated region
    $region2: #{tpu_custom_call.1} parent=1 // pred_check
      _
    $region3: #{tpu_custom_call.1} parent=1 // pred_check_branch
      %11 = sbr.rel (0) target = $region5
    $region4: #{tpu_custom_call.1} parent=1 // pred_region
      %s13 = ssub.s32 128, 128
      %14 = vsyncadd [#allocation3], %s13
      %s16 = sshll.u32 [#allocation2], 4
      %s17 = int_to_ptr.vmem [resolvable:$true] %s16
      %19 = dma.hbm_to_vmem [thread:$0]  %s0, 128, %s17, [#allocation3]
    $region5: #{tpu_custom_call.1} parent=1 // pred_fallthru
      _
    // Predicated region
    $region6: #{tpu_custom_call.1} parent=1 // pred_check
      _
    $region7: #{tpu_custom_call.1} parent=1 // pred_check_branch
      %21 = sbr.rel (0) target = $region9
    $region8: #{tpu_custom_call.1} parent=1 // pred_region
      %s23 = ssub.s32 32, 32
      %24 = vsyncadd [#allocation6], %s23
      %s26 = sshll.u32 [#allocation5], 4
      %s27 = int_to_ptr.vmem [resolvable:$true] %s26
      %29 = dma.hbm_to_vmem [thread:$0]  %s1, 32, %s27, [#allocation6]
    $region9: #{tpu_custom_call.1} parent=1 // pred_fallthru
      _
    // Predicated region
    $region10: #{tpu_custom_call.1} parent=1 // pred_check
      _
    $region11: #{tpu_custom_call.1} parent=1 // pred_check_branch
      %31 = sbr.rel (0) target = $region13
    $region12: #{tpu_custom_call.1} parent=1 // pred_region
      %32 = dma.done [#allocation3], 128
    $region13: #{tpu_custom_call.1} parent=1 // pred_fallthru
      _
    // Predicated region
    $region14: #{tpu_custom_call.1} parent=1 // pred_check
      _
    $region15: #{tpu_custom_call.1} parent=1 // pred_check_branch
      %34 = sbr.rel (0) target = $region17
    $region16: #{tpu_custom_call.1} parent=1 // pred_region
      %35 = dma.done [#allocation6], 32
    $region17: #{tpu_custom_call.1} parent=1 // pred_fallthru
      _
    %v36 = vld [vmem:[#allocation5] sm:$0x1]
    %v37 = vld [vmem:[#allocation5 + $0x1] sm:$0x1]
    %v38 = vld [vmem:[#allocation2] sm:$0xff]
    %40 = vset.pattern.permute.xlu0 0
    %41 = vperm.xlu0 %40, %v38
    %v42 = vpop.permute.xlu0 %41
    %vm44 = vcmask 261120
    %45 = vst.msk [vmem:[#allocation7] sm:$0xff] %vm44, %v42
    %46 = vset.pattern.permute.xlu0 1
    %47 = vperm.xlu0 %46, %v38
    %v48 = vpop.permute.xlu0 %47
    %vm50 = vcmask 523520
    %51 = vst.msk [vmem:[#allocation7] sm:$0xff] %vm50, %v48
    %52 = vset.pattern.permute.xlu0 2
    %53 = vperm.xlu0 %52, %v38
    %v54 = vpop.permute.xlu0 %53
    %vm56 = vcmask 785920
    %57 = vst.msk [vmem:[#allocation7] sm:$0xff] %vm56, %v54
    %58 = vset.pattern.permute.xlu0 3
    %59 = vperm.xlu0 %58, %v38
    %v60 = vpop.permute.xlu0 %59
    %vm62 = vcmask 1048320
    %63 = vst.msk [vmem:[#allocation7] sm:$0xff] %vm62, %v60
    %v64 = vld [vmem:[#allocation7] sm:$0xff]
    %v65 = vlaneseq
    %v66 = vshrl.u32 %v65, 7
    %v67 = vsub.s32 0, %v66
    %v68 = vrot.slane %v36, %v67
    %v69 = vmul.f32 %v64, %v68
    %v70 = vlaneseq
    %v71 = vshrl.u32 %v70, 7
    %v72 = vsub.s32 0, %v71
    %v73 = vrot.slane %v37, %v72
    %v74 = vadd.f32 %v69, %v73
    %v75 = vand.u32 2147483647, %v74
    %vm76 = vcmp.le.f32.partialorder %v75, 0.7853982
    %vm77 = vcmp.lt.s32.totalorder %v74, 0
    %v78 = vand.u32 %v74, 2139095040
    %v79 = vshrl.u32 %v78, 23
    %v80 = vsub.s32 %v79, 127
    %v81 = vand.u32 2147483647, %v74
    %v82 = vand.u32 %v81, 8388607
    %v83 = vor.u32 %v82, 8388608
    %v84 = vsub.s32 0, %v83
    %v85 = vadd.s32 %v80, 1
    %vm86 = vcmp.gt.s32.totalorder %v85, 0
    %v87 = vsel %vm86, %v85, 0
    %v88 = vshrl.u32 %v87, 5
    %v89 = vand.u32 %v87, 31
    %v90 = vsub.s32 32, %v89
    %v91 = vshrl.u32 683565275, %v90
    %v92 = vshll.u32 683565275, %v89
    %v93 = vshrl.u32 2475754826, %v90
    %v94 = vor.u32 %v92, %v93
    %v95 = vshll.u32 2475754826, %v89
    %v96 = vshrl.u32 2131351028, %v90
    %v97 = vor.u32 %v95, %v96
    %v98 = vshll.u32 2131351028, %v89
    %v99 = vshrl.u32 2102212464, %v90
    %v100 = vor.u32 %v98, %v99
    %v101 = vshll.u32 2102212464, %v89
    %v102 = vshrl.u32 920167782, %v90
    %v103 = vor.u32 %v101, %v102
    %v104 = vshll.u32 920167782, %v89
    %v105 = vshrl.u32 1326507024, %v90
    %v106 = vor.u32 %v104, %v105
    %vm107 = vcmp.lt.s32.totalorder %v88, 1
    %vm108 = vcmp.lt.s32.totalorder %v88, 2
    %vm109 = vcmp.lt.s32.totalorder %v88, 3
    %vm110 = vcmp.lt.s32.totalorder %v88, 4
    %v111 = vsel %vm107, %v91, %v94
    %v112 = vsel %vm110, %v100, 2102212464
    %v113 = vsel %vm109, %v97, %v112
    %v114 = vsel %vm108, %v111, %v113
    %v115 = vsel %vm107, %v94, %v97
    %v116 = vsel %vm110, %v103, 920167782
    %v117 = vsel %vm109, %v100, %v116
    %v118 = vsel %vm108, %v115, %v117
    %v119 = vsel %vm107, %v97, %v100
    %v120 = vsel %vm110, %v106, 1326507024
    %v121 = vsel %vm109, %v103, %v120
    %v122 = vsel %vm108, %v119, %v121
    %v123 = vshll.u32 %v83, 8
    %v124 = vmul.u32.u64.compose %v123, %v122
    %v125 = vextract.low.u32 %v124
    %v126 = vextract.high.u32 %v124
    %v127 = vmul.u32.u64.compose %v123, %v118
    %v128 = vextract.low.u32 %v127
    %v129 = vextract.high.u32 %v127
    %v130 = vmul.u32 %v123, %v114
    %v131 = vadd.s32 %v126, %v128
    %vm132 = vc.u32 %v126, %v128
    %v133 = vadd.s32 %v129, 1
    %v134 = vsel %vm132, %v133, %v129
    %v135 = vadd.s32 %v130, %v134
    %v136 = vadd.s32 %v135, 536870912
    %v137 = vshrl.u32 %v136, 30
    %v138 = vshll.u32 %v137, 30
    %v139 = vsub.s32 %v135, %v138
    %vm140 = vcmp.lt.s32.totalorder %v139, 0
    %v141 = vsub.s32 0, %v139
    %v142 = vsel %vm140, %v141, %v139
    %v143 = vclz %v142
    %v144 = vsub.s32 %v143, 2
    %vm145 = vcmp.gt.s32.totalorder 0, %v144
    %v146 = vsel %vm145, 0, %v144
    %v147 = vsub.s32 32, %v146
    %v148 = vshll.u32 %v139, %v146
    %v149 = vshrl.u32 %v131, %v147
    %v150 = vor.u32 %v148, %v149
    %v151 = vsub.s32 4294967266, %v146
    %v152 = vadd.s32 %v151, 127
    %v153 = vshll.u32 %v152, 23
    %v154 = vor.u32 4788187, %v153
    %v155 = vand.u32 2147483647, %v154
    %v157 = vcvt.s32.f32 %v150
    %v158 = vmul.f32 %v157, %v155
    %v159 = vxor.u32 %v158, 2147483648
    %v160 = vsel %vm77, %v159, %v158
    %v161 = vsub.s32 4, %v137
    %v162 = vsel %vm77, %v161, %v137
    %v163 = vsel %vm76, %v74, %v160
    %v164 = vsel %vm76, 0, %v162
    %v165 = vcosq.f32.pop %v163
    %v166 = vsinq.f32.pop %v163
    %vm167 = vweird.f32 %v74
    %v168 = vadd.s32 %v164, 3
    %v169 = vand.u32 %v168, 3
    %vm170 = vcmp.lt.s32.totalorder %v169, 2
    %vm171 = vcmp.eq.s32.totalorder %v169, 0
    %v172 = vxor.u32 %v166, 2147483648
    %v173 = vsel %vm171, %v165, %v172
    %vm174 = vcmp.eq.s32.totalorder %v169, 2
    %v175 = vxor.u32 %v165, 2147483648
    %v176 = vsel %vm174, %v175, %v166
    %v177 = vsel %vm170, %v173, %v176
    %v178 = vsel %vm167, nan, %v177
    %179 = vst [vmem:[#allocation7] sm:$0xff] %v178
    // Predicated region
    $region18: #{tpu_custom_call.1} parent=1 // pred_check
      _
    $region19: #{tpu_custom_call.1} parent=1 // pred_check_branch
      %181 = sbr.rel (0) target = $region21
    $region20: #{tpu_custom_call.1} parent=1 // pred_region
      %s183 = ssub.s32 128, 128
      %184 = vsyncadd [#allocation4], %s183
      %s186 = sshll.u32 [#allocation7], 4
      %s187 = int_to_ptr.vmem [resolvable:$true] %s186
      %189 = dma.vmem_to_hbm [thread:$0]  %s187, 128, %s2, [#allocation4]
    $region21: #{tpu_custom_call.1} parent=1 // pred_fallthru
      _
    // Predicated region
    $region22: #{tpu_custom_call.1} parent=1 // pred_check
      _
    $region23: #{tpu_custom_call.1} parent=1 // pred_check_branch
      %191 = sbr.rel (0) target = $region25
    $region24: #{tpu_custom_call.1} parent=1 // pred_region
      %192 = dma.done [#allocation4], 128
    $region25: #{tpu_custom_call.1} parent=1 // pred_fallthru
      _
    %193 = vsyncpa [#allocation3], 1
    %194 = vsyncpa [#allocation6], 1
    %195 = vsyncpa [#allocation4], 1

</llo_original>
